<compile_context>
chip_gen: v5e
topology: v5e:2x2
jax: 0.10.0
libtpu: 0.0.40
codegen_flags: <defaults>
</compile_context>

<pallas_src>
import jax
import jax.numpy as jnp
from jax.experimental import pallas as pl
from jax.experimental.pallas import tpu as pltpu

_LANES = 128  # lane-dense output width


def baseline_kernel(ids_ref, ew1_ref, b1_ref, w2_ref, b2_ref, w3_ref, b3_ref,
                    out_ref):
    # ids_ref is (L, Bb): L leading so the count reduction is slab-wise VPU adds.
    L, Bb = ids_ref.shape
    V = ew1_ref.shape[0]

    # --- token counts: counts[b, v] = #{l : ids[l, b] == v} -------------------
    ids = ids_ref[...]                                                   # (L, Bb)
    vocab_iota = jax.lax.broadcasted_iota(jnp.int32, (L, Bb, V), 2)      # (L, Bb, V)
    onehot = (ids[:, :, None] == vocab_iota).astype(jnp.float32)        # (L, Bb, V)
    counts = jnp.sum(onehot, axis=0)                                      # (Bb, V)  leading-axis sum -> VPU

    # --- fused mean-pool + Linear(D, H):  h = counts @ ((emb @ W1)/L) + b1 ----
    h = jnp.dot(counts, ew1_ref[...],
                preferred_element_type=jnp.float32) + b1_ref[...]         # (Bb, HP)
    h = jnp.maximum(h, 0.0)

    # --- Linear(H, H) + ReLU (lane-dense HP=256) ------------------------------
    h = jnp.dot(h, w2_ref[...],
                preferred_element_type=jnp.float32) + b2_ref[...]         # (Bb, HP)
    h = jnp.maximum(h, 0.0)

    # --- Linear(H, 1) as VPU multiply + lane reduction (no N=1 MXU push) ------
    logit = jnp.sum(h * w3_ref[...], axis=-1, keepdims=True) + b3_ref[0, 0]  # (Bb, 1)

    # Lane-dense store: broadcast the scalar across 128 lanes (unmasked vst).
    out_ref[...] = jnp.broadcast_to(logit, out_ref.shape)


def _pick_batch_block(B):
    # Single step for small batches (weights loaded once, overhead amortized).
    # For larger batches pick a 128-multiple block with >= 2 grid steps so the
    # "parallel" axis can shard across v7x's two TensorCores.
    if B < 256:
        return B
    for blk in (1024, 512, 256, 128):
        if B >= 2 * blk:
            return blk
    return 128


def baseline_forward(ids, emb, w1, b1, w2, b2, w3, b3):
    B, L = ids.shape
    V, D = emb.shape
    H = w1.shape[1]

    # Lane-dense padded hidden width (150 -> 256). Padded weights/biases are
    # exactly zero, so the math is unchanged.
    HP = ((H + _LANES - 1) // _LANES) * _LANES
    pad_h = HP - H

    # Fuse mean-pool scale and the first Linear into one (V, HP) table.
    ew1 = (emb.astype(jnp.float32) @ w1.astype(jnp.float32)) * jnp.float32(1.0 / L)
    ew1 = jnp.pad(ew1, ((0, 0), (0, pad_h)))                              # (V, HP)
    b1p = jnp.pad(b1.reshape(1, H).astype(jnp.float32), ((0, 0), (0, pad_h)))
    w2p = jnp.pad(w2.astype(jnp.float32), ((0, pad_h), (0, pad_h)))       # (HP, HP)
    b2p = jnp.pad(b2.reshape(1, H).astype(jnp.float32), ((0, 0), (0, pad_h)))
    w3p = jnp.pad(w3.reshape(1, H).astype(jnp.float32), ((0, 0), (0, pad_h)))
    b3s = b3.reshape(1, 1).astype(jnp.float32)                            # SMEM scalar

    # Batch blocking (pad the batch so it divides evenly, slice at the end).
    b_blk = _pick_batch_block(B)
    n_blk = -(-B // b_blk)
    B_pad = n_blk * b_blk

    # ids transposed so L is the leading axis inside the kernel; padded batch
    # columns use token 0 (their rows are sliced off below).
    ids_t = jnp.transpose(ids.astype(jnp.int32))                          # (L, B)
    if B_pad > B:
        ids_t = jnp.pad(ids_t, ((0, 0), (0, B_pad - B)))

    vmem = pltpu.MemorySpace.VMEM
    smem = pltpu.MemorySpace.SMEM

    out_padded = pl.pallas_call(
        baseline_kernel,
        out_shape=jax.ShapeDtypeStruct((B_pad, _LANES), jnp.float32),
        grid_spec=pltpu.PrefetchScalarGridSpec(
            num_scalar_prefetch=0,
            grid=(n_blk,),
            in_specs=[
                pl.BlockSpec((L, b_blk), lambda i: (0, i), memory_space=vmem),  # ids^T
                pl.BlockSpec((V, HP), lambda i: (0, 0), memory_space=vmem),     # EW1 (fused)
                pl.BlockSpec((1, HP), lambda i: (0, 0), memory_space=vmem),     # b1
                pl.BlockSpec((HP, HP), lambda i: (0, 0), memory_space=vmem),    # W2
                pl.BlockSpec((1, HP), lambda i: (0, 0), memory_space=vmem),     # b2
                pl.BlockSpec((1, HP), lambda i: (0, 0), memory_space=vmem),     # w3 row
                pl.BlockSpec(memory_space=smem),                                # b3 scalar
            ],
            out_specs=pl.BlockSpec((b_blk, _LANES), lambda i: (i, 0),
                                   memory_space=vmem),
        ),
        compiler_params=pltpu.CompilerParams(
            dimension_semantics=("parallel",)),
    )(ids_t, ew1, b1p, w2p, b2p, w3p, b3s)

    return out_padded[:B, :1]  # (B, 1)


if __name__ == "__main__":
    # Small, module-consistent shapes.
    B, L = 8, 16          # batch, sequence length
    V, D = 32, 32         # vocab size, embedding_dim
    H = 150               # hidden width of the MLP (from the module)

    key = jax.random.PRNGKey(0)
    k_ids, k_emb, k_w1, k_b1, k_w2, k_b2, k_w3, k_b3 = jax.random.split(key, 8)

    ids = jax.random.randint(k_ids, (B, L), 0, V, dtype=jnp.int32)
    emb = jax.random.normal(k_emb, (V, D), dtype=jnp.float32) * 0.1
    w1 = jax.random.normal(k_w1, (D, H), dtype=jnp.float32) * 0.05
    b1 = jax.random.normal(k_b1, (1, H), dtype=jnp.float32) * 0.05
    w2 = jax.random.normal(k_w2, (H, H), dtype=jnp.float32) * 0.05
    b2 = jax.random.normal(k_b2, (1, H), dtype=jnp.float32) * 0.05
    w3 = jax.random.normal(k_w3, (H, 1), dtype=jnp.float32) * 0.05
    b3 = jax.random.normal(k_b3, (1, 1), dtype=jnp.float32) * 0.05

    out = baseline_forward(ids, emb, w1, b1, w2, b2, w3, b3)
    out = jax.block_until_ready(out)

    # Pure-JAX reference (matches nn.Embedding -> mean over L -> MLP).
    ref_pooled = jnp.mean(emb[ids], axis=1)                       # (B, D)
    ref_h = jnp.maximum(ref_pooled @ w1 + b1, 0.0)
    ref_h = jnp.maximum(ref_h @ w2 + b2, 0.0)
    ref = ref_h @ w3 + b3                                          # (B, 1)

    assert out.shape == (B, 1)
    assert jnp.allclose(out, ref, atol=1e-4, rtol=1e-4), (out, ref)
    print("KERNEL_OK")
</pallas_src>

<mosaic_0001>
module attributes {stable_mosaic.version = 11 : i64} {
  func.func @baseline_kernel(%arg0: i32, %arg1: memref<16x8xi32, #tpu.memory_space<vmem>>, %arg2: memref<32x256xf32, #tpu.memory_space<vmem>>, %arg3: memref<1x256xf32, #tpu.memory_space<vmem>>, %arg4: memref<256x256xf32, #tpu.memory_space<vmem>>, %arg5: memref<1x256xf32, #tpu.memory_space<vmem>>, %arg6: memref<1x256xf32, #tpu.memory_space<vmem>>, %arg7: memref<1x1xf32, #tpu.memory_space<smem>>, %arg8: memref<8x128xf32, #tpu.memory_space<vmem>>) attributes {dimension_semantics = [#tpu.dimension_semantics<parallel>], iteration_bounds = array<i64: 1>, scalar_prefetch = 0 : i64, scratch_operands = 0 : i64, tpu.core_type = #tpu.core_type<tc>, window_params = [{transform_indices = @transform_0, window_bounds = array<i64: 16, 8>}, {pipeline_mode = #tpu.pipeline_mode<synchronous>, transform_indices = @transform_1, window_bounds = array<i64: 32, 256>}, {pipeline_mode = #tpu.pipeline_mode<synchronous>, transform_indices = @transform_2, window_bounds = array<i64: 1, 256>}, {pipeline_mode = #tpu.pipeline_mode<synchronous>, transform_indices = @transform_3, window_bounds = array<i64: 256, 256>}, {pipeline_mode = #tpu.pipeline_mode<synchronous>, transform_indices = @transform_4, window_bounds = array<i64: 1, 256>}, {pipeline_mode = #tpu.pipeline_mode<synchronous>, transform_indices = @transform_5, window_bounds = array<i64: 1, 256>}, {transform_indices = @transform_6, window_bounds = array<i64: 1, 1>}, {transform_indices = @transform_7, window_bounds = array<i64: 8, 128>}]} {
    %c0 = arith.constant 0 : index
    %c0_0 = arith.constant 0 : index
    %0 = vector.load %arg1[%c0, %c0_0] : memref<16x8xi32, #tpu.memory_space<vmem>>, vector<16x8xi32>
    %1 = tpu.iota {dimensions = array<i32: 2>} : vector<16x8x32xi32>
    %2 = vector.shape_cast %0 : vector<16x8xi32> to vector<16x8x1xi32>
    %3 = vector.broadcast %2 : vector<16x8x1xi32> to vector<16x8x32xi32>
    %4 = arith.cmpi eq, %3, %1 : vector<16x8x32xi32>
    %5 = arith.extui %4 : vector<16x8x32xi1> to vector<16x8x32xi32>
    %6 = arith.sitofp %5 : vector<16x8x32xi32> to vector<16x8x32xf32>
    %cst = arith.constant dense<0.000000e+00> : vector<8x32xf32>
    %7 = vector.multi_reduction <add>, %6, %cst [0] : vector<16x8x32xf32> to vector<8x32xf32>
    %c0_1 = arith.constant 0 : index
    %c0_2 = arith.constant 0 : index
    %8 = vector.load %arg2[%c0_1, %c0_2] : memref<32x256xf32, #tpu.memory_space<vmem>>, vector<32x256xf32>
    %cst_3 = arith.constant dense<0.000000e+00> : vector<8x256xf32>
    %9 = tpu.matmul %7, %8, %cst_3 {dimension_numbers = #tpu.dot_dimension_numbers<[1], [0], [0], [1], [0, 0, 1, 1], [], []>} : vector<8x32xf32>, vector<32x256xf32>, vector<8x256xf32> -> vector<8x256xf32>
    %c0_4 = arith.constant 0 : index
    %c0_5 = arith.constant 0 : index
    %10 = vector.load %arg3[%c0_4, %c0_5] : memref<1x256xf32, #tpu.memory_space<vmem>>, vector<1x256xf32>
    %11 = vector.broadcast %10 : vector<1x256xf32> to vector<8x256xf32>
    %12 = arith.addf %9, %11 : vector<8x256xf32>
    %cst_6 = arith.constant 0.000000e+00 : f32
    %13 = vector.broadcast %cst_6 : f32 to vector<8x256xf32>
    %14 = arith.maximumf %12, %13 : vector<8x256xf32>
    %c0_7 = arith.constant 0 : index
    %c0_8 = arith.constant 0 : index
    %15 = vector.load %arg4[%c0_7, %c0_8] : memref<256x256xf32, #tpu.memory_space<vmem>>, vector<256x256xf32>
    %cst_9 = arith.constant dense<0.000000e+00> : vector<8x256xf32>
    %16 = tpu.matmul %14, %15, %cst_9 {dimension_numbers = #tpu.dot_dimension_numbers<[1], [0], [0], [1], [0, 0, 1, 1], [], []>} : vector<8x256xf32>, vector<256x256xf32>, vector<8x256xf32> -> vector<8x256xf32>
    %c0_10 = arith.constant 0 : index
    %c0_11 = arith.constant 0 : index
    %17 = vector.load %arg5[%c0_10, %c0_11] : memref<1x256xf32, #tpu.memory_space<vmem>>, vector<1x256xf32>
    %18 = vector.broadcast %17 : vector<1x256xf32> to vector<8x256xf32>
    %19 = arith.addf %16, %18 : vector<8x256xf32>
    %cst_12 = arith.constant 0.000000e+00 : f32
    %20 = vector.broadcast %cst_12 : f32 to vector<8x256xf32>
    %21 = arith.maximumf %19, %20 : vector<8x256xf32>
    %c0_13 = arith.constant 0 : index
    %c0_14 = arith.constant 0 : index
    %22 = vector.load %arg6[%c0_13, %c0_14] : memref<1x256xf32, #tpu.memory_space<vmem>>, vector<1x256xf32>
    %23 = vector.broadcast %22 : vector<1x256xf32> to vector<8x256xf32>
    %24 = arith.mulf %21, %23 : vector<8x256xf32>
    %cst_15 = arith.constant dense<0.000000e+00> : vector<8xf32>
    %25 = vector.multi_reduction <add>, %24, %cst_15 [1] : vector<8x256xf32> to vector<8xf32>
    %26 = vector.shape_cast %25 : vector<8xf32> to vector<8x1xf32>
    %c0_16 = arith.constant 0 : index
    %c0_17 = arith.constant 0 : index
    %27 = memref.load %arg7[%c0_16, %c0_17] : memref<1x1xf32, #tpu.memory_space<smem>>
    %28 = vector.broadcast %27 : f32 to vector<8x1xf32>
    %29 = arith.addf %26, %28 : vector<8x1xf32>
    %30 = vector.shape_cast %29 : vector<8x1xf32> to vector<8x1xf32>
    %31 = vector.broadcast %30 : vector<8x1xf32> to vector<8x128xf32>
    %c0_18 = arith.constant 0 : index
    %c0_19 = arith.constant 0 : index
    %32 = vector.load %arg8[%c0_18, %c0_19] : memref<8x128xf32, #tpu.memory_space<vmem>>, vector<8x128xf32>
    tpu.vector_store %arg8[%c0_18, %c0_19], %31 {strides = array<i32>} : memref<8x128xf32, #tpu.memory_space<vmem>>, vector<8x128xf32>,
    return
  }
  func.func @transform_0(%arg0: i32) -> (i32, i32) {
    %c0_i32 = arith.constant 0 : i32
    %c0_i32_0 = arith.constant 0 : i32
    return %c0_i32, %arg0 : i32, i32
  }
  func.func @transform_1(%arg0: i32) -> (i32, i32) {
    %c0_i32 = arith.constant 0 : i32
    %c0_i32_0 = arith.constant 0 : i32
    %c0_i32_1 = arith.constant 0 : i32
    return %c0_i32, %c0_i32_0 : i32, i32
  }
  func.func @transform_2(%arg0: i32) -> (i32, i32) {
    %c0_i32 = arith.constant 0 : i32
    %c0_i32_0 = arith.constant 0 : i32
    %c0_i32_1 = arith.constant 0 : i32
    return %c0_i32, %c0_i32_0 : i32, i32
  }
  func.func @transform_3(%arg0: i32) -> (i32, i32) {
    %c0_i32 = arith.constant 0 : i32
    %c0_i32_0 = arith.constant 0 : i32
    %c0_i32_1 = arith.constant 0 : i32
    return %c0_i32, %c0_i32_0 : i32, i32
  }
  func.func @transform_4(%arg0: i32) -> (i32, i32) {
    %c0_i32 = arith.constant 0 : i32
    %c0_i32_0 = arith.constant 0 : i32
    %c0_i32_1 = arith.constant 0 : i32
    return %c0_i32, %c0_i32_0 : i32, i32
  }
  func.func @transform_5(%arg0: i32) -> (i32, i32) {
    %c0_i32 = arith.constant 0 : i32
    %c0_i32_0 = arith.constant 0 : i32
    %c0_i32_1 = arith.constant 0 : i32
    return %c0_i32, %c0_i32_0 : i32, i32
  }
  func.func @transform_6(%arg0: i32) -> (i32, i32) {
    %c0_i32 = arith.constant 0 : i32
    %c0_i32_0 = arith.constant 0 : i32
    %c0_i32_1 = arith.constant 0 : i32
    return %c0_i32, %c0_i32_0 : i32, i32
  }
  func.func @transform_7(%arg0: i32) -> (i32, i32) {
    %c0_i32 = arith.constant 0 : i32
    %c0_i32_0 = arith.constant 0 : i32
    return %arg0, %c0_i32 : i32, i32
  }
}

</mosaic_0001>

<llo_original>
// kernel: tpu_custom_call.1
$region0: #{tpu_custom_call.1}
  #allocation0 [shape = 'u32[]', space=smem, size = 0x4, offset = 0x4, fixed_abs, tag = 'smem constant byte address 0x4 - core index']
  #allocation1 [shape = 'u32[72,128]{1,0:T(1,128)}', space=vmem, size = 0x9000, scoped, tag = 'internal scratch']
  #allocation2 [shape = 'f32[1,1]{1,0:T(1,128)S(6)}', space=smem, size = 0x200, scoped, tag = 'scoped memory for tpu_custom_call.1']
  %s0 = inlined_call_operand.vmem [shape: s32[16,8], index: 0, kind: input, shape index: {}]
  %s1 = inlined_call_operand.hbm [shape: f32[32,256], index: 1, kind: input, shape index: {}]
  %s2 = inlined_call_operand.vmem [shape: f32[1,256], index: 2, kind: input, shape index: {}]
  %s3 = inlined_call_operand.hbm [shape: f32[256,256], index: 3, kind: input, shape index: {}]
  %s4 = inlined_call_operand.vmem [shape: f32[1,256], index: 4, kind: input, shape index: {}]
  %s5 = inlined_call_operand.vmem [shape: f32[1,256], index: 5, kind: input, shape index: {}]
  %s6 = inlined_call_operand.<no memory space> [shape: f32[1,1], index: 6, kind: input, shape index: {}]
  %s7 = inlined_call_operand.hbm [shape: f32[8,128], index: 7, kind: output, shape index: {}]
  %s8 = sld [smem:[#allocation0]]
  $region46: #{tpu_custom_call.1} parent=0
    _
  %s10 = ssub.s32 1, %s8
  %s11 = scalar_select 0, %s10, %s8
  %12 = sst [smem:[#allocation2]] %s6
  $region1: #{tpu_custom_call.1} parent=0
    #allocation3 [shape = 'u8[32768]{0}', space=vmem, size = 0x8000, scoped, tag = 'input window, operand 1, single buffered']
    #allocation4 [shape = 's32[1]{0}', space=sflag, size = 0x4, scoped, tag = 'scoped memory for tpu_custom_call.1']
    #allocation5 [shape = 's32[1]{0}', space=sflag, size = 0x4, scoped, tag = 'scoped memory for tpu_custom_call.1']
    #allocation6 [shape = 'u8[262144]{0}', space=vmem, size = 0x40000, scoped, tag = 'input window, operand 3, single buffered']
    #allocation7 [shape = 's32[1]{0}', space=sflag, size = 0x4, scoped, tag = 'scoped memory for tpu_custom_call.1']
    #allocation8 [shape = 'u8[4096]{0}', space=vmem, size = 0x1000, scoped, tag = 'output window, operand 0, single buffered']
    %13 = vsyncpa [#allocation4], 0
    %14 = vsyncpa [#allocation7], 0
    %15 = vsyncpa [#allocation5], 0
    // Predicated region
    $region2: #{tpu_custom_call.1} parent=1 // pred_check
      _
    $region3: #{tpu_custom_call.1} parent=1 // pred_check_branch
      %17 = sbr.rel (0) target = $region5
    $region4: #{tpu_custom_call.1} parent=1 // pred_region
      _
    $region5: #{tpu_custom_call.1} parent=1 // pred_fallthru
      _
    // Predicated region
    $region6: #{tpu_custom_call.1} parent=1 // pred_check
      _
    $region7: #{tpu_custom_call.1} parent=1 // pred_check_branch
      %19 = sbr.rel (0) target = $region9
    $region8: #{tpu_custom_call.1} parent=1 // pred_region
      %21 = vsyncadd [#allocation4], 0
      %s22 = sshll.u32 %s1, 4
      %s23 = int_to_ptr.hbm [resolvable:$true] %s22
      %s24 = sshll.u32 [#allocation3], 4
      %s25 = int_to_ptr.vmem [resolvable:$true] %s24
      %30 = dma.hbm_to_vmem [thread:$0]  %s23, 1024, %s25, [#allocation4], 256, 256, 16
    $region9: #{tpu_custom_call.1} parent=1 // pred_fallthru
      _
    // Predicated region
    $region10: #{tpu_custom_call.1} parent=1 // pred_check
      _
    $region11: #{tpu_custom_call.1} parent=1 // pred_check_branch
      %32 = sbr.rel (0) target = $region13
    $region12: #{tpu_custom_call.1} parent=1 // pred_region
      _
    $region13: #{tpu_custom_call.1} parent=1 // pred_fallthru
      _
    // Predicated region
    $region14: #{tpu_custom_call.1} parent=1 // pred_check
      _
    $region15: #{tpu_custom_call.1} parent=1 // pred_check_branch
      %34 = sbr.rel (0) target = $region17
    $region16: #{tpu_custom_call.1} parent=1 // pred_region
      %36 = vsyncadd [#allocation7], 0
      %s37 = sshll.u32 %s3, 4
      %s38 = int_to_ptr.hbm [resolvable:$true] %s37
      %s39 = sshll.u32 [#allocation6], 4
      %s40 = int_to_ptr.vmem [resolvable:$true] %s39
      %45 = dma.hbm_to_vmem [thread:$0]  %s38, 8192, %s40, [#allocation7], 256, 256, 16
    $region17: #{tpu_custom_call.1} parent=1 // pred_fallthru
      _
    // Predicated region
    $region18: #{tpu_custom_call.1} parent=1 // pred_check
      _
    $region19: #{tpu_custom_call.1} parent=1 // pred_check_branch
      %47 = sbr.rel (0) target = $region21
    $region20: #{tpu_custom_call.1} parent=1 // pred_region
      _
    $region21: #{tpu_custom_call.1} parent=1 // pred_fallthru
      _
    // Predicated region
    $region22: #{tpu_custom_call.1} parent=1 // pred_check
      _
    $region23: #{tpu_custom_call.1} parent=1 // pred_check_branch
      %49 = sbr.rel (0) target = $region25
    $region24: #{tpu_custom_call.1} parent=1 // pred_region
      _
    $region25: #{tpu_custom_call.1} parent=1 // pred_fallthru
      _
    // Predicated region
    $region26: #{tpu_custom_call.1} parent=1 // pred_check
      _
    $region27: #{tpu_custom_call.1} parent=1 // pred_check_branch
      %51 = sbr.rel (0) target = $region29
    $region28: #{tpu_custom_call.1} parent=1 // pred_region
      _
    $region29: #{tpu_custom_call.1} parent=1 // pred_fallthru
      _
    // Predicated region
    $region30: #{tpu_custom_call.1} parent=1 // pred_check
      _
    $region31: #{tpu_custom_call.1} parent=1 // pred_check_branch
      %53 = sbr.rel (0) target = $region33
    $region32: #{tpu_custom_call.1} parent=1 // pred_region
      %55 = dma.done [#allocation4], 1024
    $region33: #{tpu_custom_call.1} parent=1 // pred_fallthru
      _
    // Predicated region
    $region34: #{tpu_custom_call.1} parent=1 // pred_check
      _
    $region35: #{tpu_custom_call.1} parent=1 // pred_check_branch
      %57 = sbr.rel (0) target = $region37
    $region36: #{tpu_custom_call.1} parent=1 // pred_region
      %59 = dma.done [#allocation7], 8192
    $region37: #{tpu_custom_call.1} parent=1 // pred_fallthru
      _
    %v60 = vld [vmem:[%s0] sm:$0xff]
    %v61 = vld [vmem:[%s0 + $0x8] sm:$0xff]
    %v62 = vlaneseq
    %v63 = vand.u32 %v62, 127
    %v64 = vperm.slane %v60, 0
    %v65 = vlaneseq
    %v66 = vshrl.u32 %v65, 7
    %68 = vset.pattern.permute.xlu0 %v66
    %69 = vperm.xlu0 %68, %v64
    %v70 = vpop.permute.xlu0 %69
    %v71 = vperm.slane %v60, 1
    %v72 = vlaneseq
    %v73 = vshrl.u32 %v72, 7
    %75 = vset.pattern.permute.xlu0 %v73
    %76 = vperm.xlu0 %75, %v71
    %v77 = vpop.permute.xlu0 %76
    %v78 = vperm.slane %v60, 2
    %v79 = vlaneseq
    %v80 = vshrl.u32 %v79, 7
    %82 = vset.pattern.permute.xlu0 %v80
    %83 = vperm.xlu0 %82, %v78
    %v84 = vpop.permute.xlu0 %83
    %v85 = vperm.slane %v60, 3
    %v86 = vlaneseq
    %v87 = vshrl.u32 %v86, 7
    %89 = vset.pattern.permute.xlu0 %v87
    %90 = vperm.xlu0 %89, %v85
    %v91 = vpop.permute.xlu0 %90
    %v92 = vperm.slane %v60, 4
    %v93 = vlaneseq
    %v94 = vshrl.u32 %v93, 7
    %96 = vset.pattern.permute.xlu0 %v94
    %97 = vperm.xlu0 %96, %v92
    %v98 = vpop.permute.xlu0 %97
    %v99 = vperm.slane %v60, 5
    %v100 = vlaneseq
    %v101 = vshrl.u32 %v100, 7
    %103 = vset.pattern.permute.xlu0 %v101
    %104 = vperm.xlu0 %103, %v99
    %v105 = vpop.permute.xlu0 %104
    %v106 = vperm.slane %v60, 6
    %v107 = vlaneseq
    %v108 = vshrl.u32 %v107, 7
    %110 = vset.pattern.permute.xlu0 %v108
    %111 = vperm.xlu0 %110, %v106
    %v112 = vpop.permute.xlu0 %111
    %v113 = vperm.slane %v60, 7
    %v114 = vlaneseq
    %v115 = vshrl.u32 %v114, 7
    %117 = vset.pattern.permute.xlu0 %v115
    %118 = vperm.xlu0 %117, %v113
    %v119 = vpop.permute.xlu0 %118
    %v120 = vperm.slane %v61, 0
    %v121 = vlaneseq
    %v122 = vshrl.u32 %v121, 7
    %124 = vset.pattern.permute.xlu0 %v122
    %125 = vperm.xlu0 %124, %v120
    %v126 = vpop.permute.xlu0 %125
    %v127 = vperm.slane %v61, 1
    %v128 = vlaneseq
    %v129 = vshrl.u32 %v128, 7
    %131 = vset.pattern.permute.xlu0 %v129
    %132 = vperm.xlu0 %131, %v127
    %v133 = vpop.permute.xlu0 %132
    %v134 = vperm.slane %v61, 2
    %v135 = vlaneseq
    %v136 = vshrl.u32 %v135, 7
    %138 = vset.pattern.permute.xlu0 %v136
    %139 = vperm.xlu0 %138, %v134
    %v140 = vpop.permute.xlu0 %139
    %v141 = vperm.slane %v61, 3
    %v142 = vlaneseq
    %v143 = vshrl.u32 %v142, 7
    %145 = vset.pattern.permute.xlu0 %v143
    %146 = vperm.xlu0 %145, %v141
    %v147 = vpop.permute.xlu0 %146
    %v148 = vperm.slane %v61, 4
    %v149 = vlaneseq
    %v150 = vshrl.u32 %v149, 7
    %152 = vset.pattern.permute.xlu0 %v150
    %153 = vperm.xlu0 %152, %v148
    %v154 = vpop.permute.xlu0 %153
    %v155 = vperm.slane %v61, 5
    %v156 = vlaneseq
    %v157 = vshrl.u32 %v156, 7
    %159 = vset.pattern.permute.xlu0 %v157
    %160 = vperm.xlu0 %159, %v155
    %v161 = vpop.permute.xlu0 %160
    %v162 = vperm.slane %v61, 6
    %v163 = vlaneseq
    %v164 = vshrl.u32 %v163, 7
    %166 = vset.pattern.permute.xlu0 %v164
    %167 = vperm.xlu0 %166, %v162
    %v168 = vpop.permute.xlu0 %167
    %v169 = vperm.slane %v61, 7
    %v170 = vlaneseq
    %v171 = vshrl.u32 %v170, 7
    %173 = vset.pattern.permute.xlu0 %v171
    %174 = vperm.xlu0 %173, %v169
    %v175 = vpop.permute.xlu0 %174
    %vm176 = vcmp.eq.s32.totalorder %v70, %v63
    %vm177 = vcmp.eq.s32.totalorder %v77, %v63
    %vm178 = vcmp.eq.s32.totalorder %v84, %v63
    %vm179 = vcmp.eq.s32.totalorder %v91, %v63
    %vm180 = vcmp.eq.s32.totalorder %v98, %v63
    %vm181 = vcmp.eq.s32.totalorder %v105, %v63
    %vm182 = vcmp.eq.s32.totalorder %v112, %v63
    %vm183 = vcmp.eq.s32.totalorder %v119, %v63
    %vm184 = vcmp.eq.s32.totalorder %v126, %v63
    %vm185 = vcmp.eq.s32.totalorder %v133, %v63
    %vm186 = vcmp.eq.s32.totalorder %v140, %v63
    %vm187 = vcmp.eq.s32.totalorder %v147, %v63
    %vm188 = vcmp.eq.s32.totalorder %v154, %v63
    %vm189 = vcmp.eq.s32.totalorder %v161, %v63
    %vm190 = vcmp.eq.s32.totalorder %v168, %v63
    %vm191 = vcmp.eq.s32.totalorder %v175, %v63
    %v192 = vsel %vm176, 1, 0
    %v193 = vsel %vm177, 1, 0
    %v194 = vsel %vm178, 1, 0
    %v195 = vsel %vm179, 1, 0
    %v196 = vsel %vm180, 1, 0
    %v197 = vsel %vm181, 1, 0
    %v198 = vsel %vm182, 1, 0
    %v199 = vsel %vm183, 1, 0
    %v200 = vsel %vm184, 1, 0
    %v201 = vsel %vm185, 1, 0
    %v202 = vsel %vm186, 1, 0
    %v203 = vsel %vm187, 1, 0
    %v204 = vsel %vm188, 1, 0
    %v205 = vsel %vm189, 1, 0
    %v206 = vsel %vm190, 1, 0
    %v207 = vsel %vm191, 1, 0
    %v208 = vcvt.s32.f32 %v192
    %v209 = vcvt.s32.f32 %v193
    %v210 = vcvt.s32.f32 %v194
    %v211 = vcvt.s32.f32 %v195
    %v212 = vcvt.s32.f32 %v196
    %v213 = vcvt.s32.f32 %v197
    %v214 = vcvt.s32.f32 %v198
    %v215 = vcvt.s32.f32 %v199
    %v216 = vcvt.s32.f32 %v200
    %v217 = vcvt.s32.f32 %v201
    %v218 = vcvt.s32.f32 %v202
    %v219 = vcvt.s32.f32 %v203
    %v220 = vcvt.s32.f32 %v204
    %v221 = vcvt.s32.f32 %v205
    %v222 = vcvt.s32.f32 %v206
    %v223 = vcvt.s32.f32 %v207
    %vm224 = vcmask 261120
    %v225 = vsel %vm224, %v208, 0.0
    %v226 = vsel %vm224, %v209, 0.0
    %v227 = vadd.f32 %v225, %v226
    %v228 = vsel %vm224, %v210, 0.0
    %v229 = vadd.f32 %v227, %v228
    %v230 = vsel %vm224, %v211, 0.0
    %v231 = vadd.f32 %v229, %v230
    %v232 = vsel %vm224, %v212, 0.0
    %v233 = vadd.f32 %v231, %v232
    %v234 = vsel %vm224, %v213, 0.0
    %v235 = vadd.f32 %v233, %v234
    %v236 = vsel %vm224, %v214, 0.0
    %v237 = vadd.f32 %v235, %v236
    %v238 = vsel %vm224, %v215, 0.0
    %v239 = vadd.f32 %v237, %v238
    %v240 = vsel %vm224, %v216, 0.0
    %v241 = vadd.f32 %v239, %v240
    %v242 = vsel %vm224, %v217, 0.0
    %v243 = vadd.f32 %v241, %v242
    %v244 = vsel %vm224, %v218, 0.0
    %v245 = vadd.f32 %v243, %v244
    %v246 = vsel %vm224, %v219, 0.0
    %v247 = vadd.f32 %v245, %v246
    %v248 = vsel %vm224, %v220, 0.0
    %v249 = vadd.f32 %v247, %v248
    %v250 = vsel %vm224, %v221, 0.0
    %v251 = vadd.f32 %v249, %v250
    %v252 = vsel %vm224, %v222, 0.0
    %v253 = vadd.f32 %v251, %v252
    %v254 = vsel %vm224, %v223, 0.0
    %v255 = vadd.f32 %v253, %v254
    %v256 = vld [vmem:[#allocation3] sm:$0xff]
    %v257 = vld [vmem:[#allocation3 + $0x8] sm:$0xff]
    %v258 = vld [vmem:[#allocation3 + $0x10] sm:$0xff]
    %v259 = vld [vmem:[#allocation3 + $0x18] sm:$0xff]
    %v260 = vld [vmem:[#allocation3 + $0x20] sm:$0xff]
    %v261 = vld [vmem:[#allocation3 + $0x28] sm:$0xff]
    %v262 = vld [vmem:[#allocation3 + $0x30] sm:$0xff]
    %v263 = vld [vmem:[#allocation3 + $0x38] sm:$0xff]
    %v264 = vld [vmem:[%s2] sm:$0x3]
    %v266 = vperm.slane %v264, 0
    %v267 = vperm.slane %v264, 1
    %v271 = vsel %vm224, %v255, 0
    %273 = vmatpush.msra.mxu0 0.0
    %274 = vmatpush.msra.mxu0 0.0
    %275 = vmatpush.msra.mxu0 0.0
    %276 = vmatpush.msra.mxu0 0.0
    %277 = vmatpush.msra.mxu0 0.0
    %278 = vmatpush.msra.mxu0 0.0
    %279 = vmatpush.msra.mxu0 0.0
    %280 = vmatpush.msra.mxu0 0.0
    %281 = vmatpush.msra.mxu0 0.0
    %282 = vmatpush.msra.mxu0 0.0
    %283 = vmatpush.msra.mxu0 0.0
    %284 = vmatpush.msra.mxu0 0.0
    %285 = vmatpush.msra.mxu0 %v262
    %286 = vmatpush.msra.mxu0 %v260
    %287 = vmatpush.msra.mxu0 %v258
    %288 = vmatpush.msra.mxu0 %v256
    %289 = vmatmul.f32.gmra.mxu0 %v271
    %v290 = vpop.f32.mrf.mxu0
    %v291 = vadd.f32 %v266, %v290
    %292 = vdwg.mxu0
    %293 = vmatpush.msra.mxu0 0.0
    %294 = vmatpush.msra.mxu0 0.0
    %295 = vmatpush.msra.mxu0 0.0
    %296 = vmatpush.msra.mxu0 0.0
    %297 = vmatpush.msra.mxu0 0.0
    %298 = vmatpush.msra.mxu0 0.0
    %299 = vmatpush.msra.mxu0 0.0
    %300 = vmatpush.msra.mxu0 0.0
    %301 = vmatpush.msra.mxu0 0.0
    %302 = vmatpush.msra.mxu0 0.0
    %303 = vmatpush.msra.mxu0 0.0
    %304 = vmatpush.msra.mxu0 0.0
    %305 = vmatpush.msra.mxu0 %v263
    %306 = vmatpush.msra.mxu0 %v261
    %307 = vmatpush.msra.mxu0 %v259
    %308 = vmatpush.msra.mxu0 %v257
    %309 = vmatmul.f32.gmra.mxu0 %v271
    %v310 = vpop.f32.mrf.mxu0
    %v311 = vadd.f32 %v267, %v310
    %312 = vdwg.mxu0
    %v313 = vmax.f32 %v291, 0.0
    %v314 = vmax.f32 %v311, 0.0
    %v315 = vld [vmem:[#allocation6] sm:$0xff]
    %v316 = vld [vmem:[#allocation6 + $0x8] sm:$0xff]
    %v317 = vld [vmem:[#allocation6 + $0x10] sm:$0xff]
    %v318 = vld [vmem:[#allocation6 + $0x18] sm:$0xff]
    %v319 = vld [vmem:[#allocation6 + $0x20] sm:$0xff]
    %v320 = vld [vmem:[#allocation6 + $0x28] sm:$0xff]
    %v321 = vld [vmem:[#allocation6 + $0x30] sm:$0xff]
    %v322 = vld [vmem:[#allocation6 + $0x38] sm:$0xff]
    %v323 = vld [vmem:[#allocation6 + $0x40] sm:$0xff]
    %v324 = vld [vmem:[#allocation6 + $0x48] sm:$0xff]
    %v325 = vld [vmem:[#allocation6 + $0x50] sm:$0xff]
    %v326 = vld [vmem:[#allocation6 + $0x58] sm:$0xff]
    %v327 = vld [vmem:[#allocation6 + $0x60] sm:$0xff]
    %v328 = vld [vmem:[#allocation6 + $0x68] sm:$0xff]
    %v329 = vld [vmem:[#allocation6 + $0x70] sm:$0xff]
    %v330 = vld [vmem:[#allocation6 + $0x78] sm:$0xff]
    %v331 = vld [vmem:[#allocation6 + $0x80] sm:$0xff]
    %v332 = vld [vmem:[#allocation6 + $0x88] sm:$0xff]
    %v333 = vld [vmem:[#allocation6 + $0x90] sm:$0xff]
    %v334 = vld [vmem:[#allocation6 + $0x98] sm:$0xff]
    %v335 = vld [vmem:[#allocation6 + $0xa0] sm:$0xff]
    %v336 = vld [vmem:[#allocation6 + $0xa8] sm:$0xff]
    %v337 = vld [vmem:[#allocation6 + $0xb0] sm:$0xff]
    %v338 = vld [vmem:[#allocation6 + $0xb8] sm:$0xff]
    %v339 = vld [vmem:[#allocation6 + $0xc0] sm:$0xff]
    %v340 = vld [vmem:[#allocation6 + $0xc8] sm:$0xff]
    %v341 = vld [vmem:[#allocation6 + $0xd0] sm:$0xff]
    %v342 = vld [vmem:[#allocation6 + $0xd8] sm:$0xff]
    %v343 = vld [vmem:[#allocation6 + $0xe0] sm:$0xff]
    %v344 = vld [vmem:[#allocation6 + $0xe8] sm:$0xff]
    %v345 = vld [vmem:[#allocation6 + $0xf0] sm:$0xff]
    %v346 = vld [vmem:[#allocation6 + $0xf8] sm:$0xff]
    %v347 = vld [vmem:[#allocation6 + $0x100] sm:$0xff]
    %v348 = vld [vmem:[#allocation6 + $0x108] sm:$0xff]
    %v349 = vld [vmem:[#allocation6 + $0x110] sm:$0xff]
    %v350 = vld [vmem:[#allocation6 + $0x118] sm:$0xff]
    %v351 = vld [vmem:[#allocation6 + $0x120] sm:$0xff]
    %v352 = vld [vmem:[#allocation6 + $0x128] sm:$0xff]
    %v353 = vld [vmem:[#allocation6 + $0x130] sm:$0xff]
    %v354 = vld [vmem:[#allocation6 + $0x138] sm:$0xff]
    %v355 = vld [vmem:[#allocation6 + $0x140] sm:$0xff]
    %v356 = vld [vmem:[#allocation6 + $0x148] sm:$0xff]
    %v357 = vld [vmem:[#allocation6 + $0x150] sm:$0xff]
    %v358 = vld [vmem:[#allocation6 + $0x158] sm:$0xff]
    %v359 = vld [vmem:[#allocation6 + $0x160] sm:$0xff]
    %v360 = vld [vmem:[#allocation6 + $0x168] sm:$0xff]
    %v361 = vld [vmem:[#allocation6 + $0x170] sm:$0xff]
    %v362 = vld [vmem:[#allocation6 + $0x178] sm:$0xff]
    %v363 = vld [vmem:[#allocation6 + $0x180] sm:$0xff]
    %v364 = vld [vmem:[#allocation6 + $0x188] sm:$0xff]
    %v365 = vld [vmem:[#allocation6 + $0x190] sm:$0xff]
    %v366 = vld [vmem:[#allocation6 + $0x198] sm:$0xff]
    %v367 = vld [vmem:[#allocation6 + $0x1a0] sm:$0xff]
    %v368 = vld [vmem:[#allocation6 + $0x1a8] sm:$0xff]
    %v369 = vld [vmem:[#allocation6 + $0x1b0] sm:$0xff]
    %v370 = vld [vmem:[#allocation6 + $0x1b8] sm:$0xff]
    %v371 = vld [vmem:[#allocation6 + $0x1c0] sm:$0xff]
    %v372 = vld [vmem:[#allocation6 + $0x1c8] sm:$0xff]
    %v373 = vld [vmem:[#allocation6 + $0x1d0] sm:$0xff]
    %v374 = vld [vmem:[#allocation6 + $0x1d8] sm:$0xff]
    %v375 = vld [vmem:[#allocation6 + $0x1e0] sm:$0xff]
    %v376 = vld [vmem:[#allocation6 + $0x1e8] sm:$0xff]
    %v377 = vld [vmem:[#allocation6 + $0x1f0] sm:$0xff]
    %v378 = vld [vmem:[#allocation6 + $0x1f8] sm:$0xff]
    %v379 = vld [vmem:[%s4] sm:$0x3]
    %v381 = vperm.slane %v379, 0
    %v382 = vperm.slane %v379, 1
    %385 = vmatpush.msra.mxu0 %v345
    %386 = vmatpush.msra.mxu0 %v343
    %387 = vmatpush.msra.mxu0 %v341
    %388 = vmatpush.msra.mxu0 %v339
    %389 = vmatpush.msra.mxu0 %v337
    %390 = vmatpush.msra.mxu0 %v335
    %391 = vmatpush.msra.mxu0 %v333
    %392 = vmatpush.msra.mxu0 %v331
    %393 = vmatpush.msra.mxu0 %v329
    %394 = vmatpush.msra.mxu0 %v327
    %395 = vmatpush.msra.mxu0 %v325
    %396 = vmatpush.msra.mxu0 %v323
    %397 = vmatpush.msra.mxu0 %v321
    %398 = vmatpush.msra.mxu0 %v319
    %399 = vmatpush.msra.mxu0 %v317
    %400 = vmatpush.msra.mxu0 %v315
    %401 = vmatmul.f32.gmra.mxu0 %v313
    %v402 = vpop.f32.mrf.mxu0
    %v403 = vadd.f32 %v381, %v402
    %404 = vdwg.mxu0
    %405 = vmatpush.msra.mxu0 %v377
    %406 = vmatpush.msra.mxu0 %v375
    %407 = vmatpush.msra.mxu0 %v373
    %408 = vmatpush.msra.mxu0 %v371
    %409 = vmatpush.msra.mxu0 %v369
    %410 = vmatpush.msra.mxu0 %v367
    %411 = vmatpush.msra.mxu0 %v365
    %412 = vmatpush.msra.mxu0 %v363
    %413 = vmatpush.msra.mxu0 %v361
    %414 = vmatpush.msra.mxu0 %v359
    %415 = vmatpush.msra.mxu0 %v357
    %416 = vmatpush.msra.mxu0 %v355
    %417 = vmatpush.msra.mxu0 %v353
    %418 = vmatpush.msra.mxu0 %v351
    %419 = vmatpush.msra.mxu0 %v349
    %420 = vmatpush.msra.mxu0 %v347
    %421 = vmatmul.f32.gmra.mxu0 %v314
    %v422 = vpop.f32.mrf.mxu0
    %v423 = vadd.f32 %v403, %v422
    %424 = vdwg.mxu0
    %425 = vmatpush.msra.mxu0 %v346
    %426 = vmatpush.msra.mxu0 %v344
    %427 = vmatpush.msra.mxu0 %v342
    %428 = vmatpush.msra.mxu0 %v340
    %429 = vmatpush.msra.mxu0 %v338
    %430 = vmatpush.msra.mxu0 %v336
    %431 = vmatpush.msra.mxu0 %v334
    %432 = vmatpush.msra.mxu0 %v332
    %433 = vmatpush.msra.mxu0 %v330
    %434 = vmatpush.msra.mxu0 %v328
    %435 = vmatpush.msra.mxu0 %v326
    %436 = vmatpush.msra.mxu0 %v324
    %437 = vmatpush.msra.mxu0 %v322
    %438 = vmatpush.msra.mxu0 %v320
    %439 = vmatpush.msra.mxu0 %v318
    %440 = vmatpush.msra.mxu0 %v316
    %441 = vmatmul.f32.gmra.mxu0 %v313
    %v442 = vpop.f32.mrf.mxu0
    %v443 = vadd.f32 %v382, %v442
    %444 = vdwg.mxu0
    %445 = vmatpush.msra.mxu0 %v378
    %446 = vmatpush.msra.mxu0 %v376
    %447 = vmatpush.msra.mxu0 %v374
    %448 = vmatpush.msra.mxu0 %v372
    %449 = vmatpush.msra.mxu0 %v370
    %450 = vmatpush.msra.mxu0 %v368
    %451 = vmatpush.msra.mxu0 %v366
    %452 = vmatpush.msra.mxu0 %v364
    %453 = vmatpush.msra.mxu0 %v362
    %454 = vmatpush.msra.mxu0 %v360
    %455 = vmatpush.msra.mxu0 %v358
    %456 = vmatpush.msra.mxu0 %v356
    %457 = vmatpush.msra.mxu0 %v354
    %458 = vmatpush.msra.mxu0 %v352
    %459 = vmatpush.msra.mxu0 %v350
    %460 = vmatpush.msra.mxu0 %v348
    %461 = vmatmul.f32.gmra.mxu0 %v314
    %v462 = vpop.f32.mrf.mxu0
    %v463 = vadd.f32 %v443, %v462
    %464 = vdwg.mxu0
    %v465 = vmax.f32 %v423, 0.0
    %v466 = vmax.f32 %v463, 0.0
    %v467 = vld [vmem:[%s5] sm:$0x3]
    %v469 = vperm.slane %v467, 0
    %v470 = vperm.slane %v467, 1
    %v473 = vmul.f32 %v465, %v469
    %v474 = vmul.f32 %v466, %v470
    %v475 = vadd.f32 %v473, %v474
    %476 = vadd.xlane.f32.xlu0 %v475
    %v477 = vpop.xlane.xlu0 %476
    %s478 = sld [smem:[#allocation2]]
    %v479 = vstv %s478
    %v480 = vadd.f32 %v477, %v479
    %481 = vst [vmem:[#allocation8] sm:$0xff] %v480
    // Predicated region
    $region38: #{tpu_custom_call.1} parent=1 // pred_check
      _
    $region39: #{tpu_custom_call.1} parent=1 // pred_check_branch
      %483 = sbr.rel (0) target = $region41
    $region40: #{tpu_custom_call.1} parent=1 // pred_region
      %485 = vsyncadd [#allocation5], 0
      %s487 = sshll.u32 [#allocation8], 4
      %s488 = int_to_ptr.vmem [resolvable:$true] %s487
      %s489 = sshll.u32 %s7, 4
      %s490 = int_to_ptr.hbm [resolvable:$true] %s489
      %492 = dma.vmem_to_hbm [thread:$0]  %s488, 128, %s490, [#allocation5]
    $region41: #{tpu_custom_call.1} parent=1 // pred_fallthru
      _
    // Predicated region
    $region42: #{tpu_custom_call.1} parent=1 // pred_check
      _
    $region43: #{tpu_custom_call.1} parent=1 // pred_check_branch
      %494 = sbr.rel (0) target = $region45
    $region44: #{tpu_custom_call.1} parent=1 // pred_region
      %496 = dma.done [#allocation5], 128
    $region45: #{tpu_custom_call.1} parent=1 // pred_fallthru
      _
    %497 = vsyncpa [#allocation4], 1
    %498 = vsyncpa [#allocation7], 1
    %499 = vsyncpa [#allocation5], 1

</llo_original>
